<compile_context>
chip_gen: v7x
topology: tpu7x:2x2x1
jax: 0.10.0
libtpu: 0.0.40
codegen_flags: <defaults>
</compile_context>

<pallas_src>
import jax
import jax.numpy as jnp
from jax.experimental import pallas as pl
from jax.experimental.pallas import tpu as pltpu

# Static problem sizes (small, consistent with the module's broadcast).
C_IN, C_OUT, K = 3, 2, 3
H, W = 5, 5                     # input spatial
HO, WO = H - K + 1, W - K + 1   # conv output spatial (= 3, 3)
R_N = 2                         # leading dim of the randn(2,2,3,3) tensor
P = HO * WO                     # 9 output pixels
CKK1 = C_IN * K * K + 1         # 28 = im2col rows + bias row
LANES = 128                     # lane-padded minor dim

# Packed-slab row layout; every section starts on an 8-row (sublane-tile)
# boundary so the in-kernel slices are aligned views.
ROW_PATCH = 0                   # rows  0..27 : im2col patches + ones row, cols 0..8
ROW_R16 = 32                    # rows 32..35 : (1.6 - r) flattened (4, P), cols 0..8
ROW_W = 40                      # rows 40..41 : [w | b]  (2, CKK1), cols 0..27
SLAB_ROWS = 48


def _model_kernel(slab_ref, o_ref):
    """slab_ref: VMEM (48, 128)  single packed input slab (one DMA)
       o_ref:    VMEM (4, 128)   v3 flattened, lane-padded (wrapper slices :P)
    """
    patches = slab_ref[ROW_PATCH:ROW_PATCH + CKK1, :]       # (28, 128), zeros past col 8
    w_aug = slab_ref[ROW_W:ROW_W + C_OUT, 0:CKK1]           # (2, 28)

    # Conv + bias as one contraction.  LHS is (M=2, K=28), RHS is (K=28, N=128):
    # K sits on the natural axes and N is already lane-dense, so no transpose
    # is inserted and the result lands as full (2, 128) vreg rows.
    v1 = jnp.dot(w_aug, patches, preferred_element_type=jnp.float32)  # (2, 128)

    # v3 = (1.6 - r) * v1 == 1.6*v1 - r*v1.  Broadcast of v1 over the leading
    # randn dim via two half-tile multiplies/stores (no in-kernel concatenate).
    o_ref[0:C_OUT, :] = slab_ref[ROW_R16:ROW_R16 + C_OUT, :] * v1
    o_ref[C_OUT:2 * C_OUT, :] = (
        slab_ref[ROW_R16 + C_OUT:ROW_R16 + 2 * C_OUT, :] * v1
    )


def model_forward(x, w, b, r):
    """x: (1, C_IN, H, W) f32; w: (C_OUT, C_IN, K, K) f32; b: (C_OUT,) f32;
       r: (R_N, C_OUT, HO, WO) f32.  Returns (R_N, C_OUT, HO, WO) f32."""
    x3d = x[0]  # squeeze batch of 1 -> (C_IN, H, W)

    # im2col in the wrapper (static slices, XLA fuses these for free).
    rows = []
    for c in range(C_IN):
        for kh in range(K):
            for kw in range(K):
                rows.append(x3d[c, kh:kh + HO, kw:kw + WO].reshape(-1))
    patches = jnp.stack(rows, axis=0)                                    # (27, 9)
    patches = jnp.concatenate(
        [patches, jnp.ones((1, P), jnp.float32)], axis=0)                # (28, 9)

    # Fold bias into the contraction: w_aug @ patches == conv + bias.
    w_aug = jnp.concatenate([w.reshape(C_OUT, -1), b[:, None]], axis=1)  # (2, 28)

    # Fold the epilogue constant: (1.6 - r), flattened with rows
    # [n0oc0, n0oc1, n1oc0, n1oc1] to match the output layout.
    r16 = (1.6 - r).reshape(R_N * C_OUT, P)                              # (4, 9)

    # Pack everything into ONE lane-padded slab -> a single input DMA.
    slab = jnp.zeros((SLAB_ROWS, LANES), jnp.float32)
    slab = slab.at[ROW_PATCH:ROW_PATCH + CKK1, 0:P].set(patches)
    slab = slab.at[ROW_R16:ROW_R16 + R_N * C_OUT, 0:P].set(r16)
    slab = slab.at[ROW_W:ROW_W + C_OUT, 0:CKK1].set(w_aug)

    out2d = pl.pallas_call(
        _model_kernel,
        out_shape=jax.ShapeDtypeStruct((R_N * C_OUT, LANES), jnp.float32),
        in_specs=[pl.BlockSpec(memory_space=pltpu.MemorySpace.VMEM)],
        out_specs=pl.BlockSpec(memory_space=pltpu.MemorySpace.VMEM),
    )(slab)

    # Padded lanes (cols 9..127) are exact zeros; slice them off at the end.
    return out2d[:, :P].reshape(R_N, C_OUT, HO, WO)


if __name__ == "__main__":
    key = jax.random.PRNGKey(0)
    kx, kw, kb, kr = jax.random.split(key, 4)

    # Input (small shape consistent with the module's broadcast arithmetic).
    x = jax.random.normal(kx, (1, C_IN, H, W), dtype=jnp.float32)

    # Deterministic Conv2d(3, 2, 3) parameters (PyTorch-style uniform init).
    fan_in = C_IN * K * K
    bound = 1.0 / (fan_in ** 0.5)
    w = jax.random.uniform(kw, (C_OUT, C_IN, K, K), minval=-bound, maxval=bound,
                           dtype=jnp.float32)
    b = jax.random.uniform(kb, (C_OUT,), minval=-bound, maxval=bound,
                           dtype=jnp.float32)

    # Deterministic stand-in for torch.randn(2, 2, 3, 3).
    # TODO(synk): if fresh per-call randomness is required, generate r inside
    # the kernel with pltpu.prng_seed + pltpu.stateful_normal (removes one
    # slab section entirely) instead of passing a host tensor.
    r = jax.random.normal(kr, (R_N, C_OUT, HO, WO), dtype=jnp.float32)

    out = model_forward(x, w, b, r)
    jax.block_until_ready(out)

    # Pure-JAX reference check (conv via lax + broadcasting, unfolded epilogue).
    v1_ref = jax.lax.conv_general_dilated(
        x, w, window_strides=(1, 1), padding="VALID",
        dimension_numbers=("NCHW", "OIHW", "NCHW")) + b[None, :, None, None]
    v3_ref = 1.6 * v1_ref - r * v1_ref
    assert jnp.allclose(out, v3_ref, atol=1e-5, rtol=1e-5), "mismatch vs reference"

    print("KERNEL_OK")
</pallas_src>

<mosaic_0001>
module attributes {stable_mosaic.version = 11 : i64} {
  func.func @_model_kernel(%arg0: memref<48x128xf32, #tpu.memory_space<vmem>>, %arg1: memref<4x128xf32, #tpu.memory_space<vmem>>) attributes {dimension_semantics = [], scalar_prefetch = 0 : i64, scratch_operands = 0 : i64, tpu.core_type = #tpu.core_type<tc>} {
    %c0 = arith.constant 0 : index
    %c0_0 = arith.constant 0 : index
    %0 = vector.load %arg0[%c0, %c0_0] : memref<48x128xf32, #tpu.memory_space<vmem>>, vector<28x128xf32>
    %c40 = arith.constant 40 : index
    %c0_1 = arith.constant 0 : index
    %1 = vector.load %arg0[%c40, %c0_1] : memref<48x128xf32, #tpu.memory_space<vmem>>, vector<2x28xf32>
    %cst = arith.constant dense<0.000000e+00> : vector<2x128xf32>
    %2 = tpu.matmul %1, %0, %cst {dimension_numbers = #tpu.dot_dimension_numbers<[1], [0], [0], [1], [0, 0, 1, 1], [], []>} : vector<2x28xf32>, vector<28x128xf32>, vector<2x128xf32> -> vector<2x128xf32>
    %c32 = arith.constant 32 : index
    %c0_2 = arith.constant 0 : index
    %3 = vector.load %arg0[%c32, %c0_2] : memref<48x128xf32, #tpu.memory_space<vmem>>, vector<2x128xf32>
    %4 = arith.mulf %3, %2 : vector<2x128xf32>
    %c0_3 = arith.constant 0 : index
    %c0_4 = arith.constant 0 : index
    %5 = vector.load %arg1[%c0_3, %c0_4] : memref<4x128xf32, #tpu.memory_space<vmem>>, vector<2x128xf32>
    tpu.vector_store %arg1[%c0_3, %c0_4], %4 {strides = array<i32>} : memref<4x128xf32, #tpu.memory_space<vmem>>, vector<2x128xf32>,
    %c34 = arith.constant 34 : index
    %c0_5 = arith.constant 0 : index
    %6 = vector.load %arg0[%c34, %c0_5] : memref<48x128xf32, #tpu.memory_space<vmem>>, vector<2x128xf32>
    %7 = arith.mulf %6, %2 : vector<2x128xf32>
    %c2 = arith.constant 2 : index
    %c0_6 = arith.constant 0 : index
    %8 = vector.load %arg1[%c2, %c0_6] : memref<4x128xf32, #tpu.memory_space<vmem>>, vector<2x128xf32>
    tpu.vector_store %arg1[%c2, %c0_6], %7 {strides = array<i32>} : memref<4x128xf32, #tpu.memory_space<vmem>>, vector<2x128xf32>,
    return
  }
}

</mosaic_0001>

<llo_original>
// kernel: tpu_custom_call.1
$region0: #{tpu_custom_call.1}
  #allocation0 [shape = 'u32[]', space=smem, size = 0x4, offset = 0x4, fixed_abs, tag = 'smem constant byte address 0x4 - core index']
  #allocation1 [shape = 'u32[144,128]{1,0:T(1,128)}', space=vmem, size = 0x12000, scoped, tag = 'internal scratch']
  %s0 = inlined_call_operand.hbm [shape: f32[48,128], index: 0, kind: input, shape index: {}]
  %s1 = inlined_call_operand.hbm [shape: f32[4,128], index: 1, kind: output, shape index: {}]
  %s2 = sld [smem:[#allocation0]]
  $region18: #{tpu_custom_call.1} parent=0
    _
  %s4 = ssub.s32 1, %s2
  %s5 = scalar_select 0, %s4, %s2
  $region1: #{tpu_custom_call.1} parent=0
    #allocation2 [shape = 'u8[24576]{0}', space=vmem, size = 0x6000, scoped, tag = 'input window, operand 0, single buffered']
    #allocation3 [shape = 's32[1]{0}', space=sflag, size = 0x4, scoped, tag = 'scoped memory for tpu_custom_call.1']
    #allocation4 [shape = 's32[1]{0}', space=sflag, size = 0x4, scoped, tag = 'scoped memory for tpu_custom_call.1']
    #allocation5 [shape = 'u8[2048]{0}', space=vmem, size = 0x800, scoped, tag = 'output window, operand 0, single buffered']
    %6 = vsyncpa [#allocation3], 0
    %7 = vsyncpa [#allocation4], 0
    // Predicated region
    $region2: #{tpu_custom_call.1} parent=1 // pred_check
      _
    $region3: #{tpu_custom_call.1} parent=1 // pred_check_branch
      %9 = sbr.rel (0) target = $region5
    $region4: #{tpu_custom_call.1} parent=1 // pred_region
      %s11 = ssub.s32 768, 768
      %12 = vsyncadd [#allocation3], %s11
      %s13 = sshll.u32 [#allocation2], 4
      %s14 = int_to_ptr.vmem [resolvable:$true] %s13
      %19 = dma.hbm_to_vmem [thread:$0]  %s0, 768, %s14, [#allocation3], 128, 128, 8
    $region5: #{tpu_custom_call.1} parent=1 // pred_fallthru
      _
    // Predicated region
    $region6: #{tpu_custom_call.1} parent=1 // pred_check
      _
    $region7: #{tpu_custom_call.1} parent=1 // pred_check_branch
      %21 = sbr.rel (0) target = $region9
    $region8: #{tpu_custom_call.1} parent=1 // pred_region
      %22 = dma.done [#allocation3], 768
    $region9: #{tpu_custom_call.1} parent=1 // pred_fallthru
      _
    %v23 = vld [vmem:[#allocation2] sm:$0xff]
    %v24 = vld [vmem:[#allocation2 + $0x8] sm:$0xff]
    %v25 = vld [vmem:[#allocation2 + $0x10] sm:$0xff]
    %v26 = vld [vmem:[#allocation2 + $0x18] sm:$0xf]
    %v27 = vld [vmem:[#allocation2 + $0x28] sm:$0x3]
    %vm28 = vcmask 228352
    %v30 = vsel %vm28, %v27, 0
    %vm32 = vcmask 1043456
    %v34 = vsel %vm32, %v26, 0
    %36 = vmatprep.subr.mxu0 0.0
    %37 = vmatpush1.msra.mxu0 %v23
    %38 = vmatprep.subr.mxu0 0.0
    %39 = vmatpush1.msra.mxu0 %v24
    %40 = vmatprep.subr.mxu0 0.0
    %41 = vmatpush1.msra.mxu0 %v25
    %42 = vmatprep.subr.mxu0 0.0
    %43 = vmatpush1.msra.mxu0 %v34
    %44 = vmatprep.subr.mxu0 0.0
    %45 = vmatpush1.msra.mxu0 0.0
    %46 = vmatprep.subr.mxu0 0.0
    %47 = vmatpush1.msra.mxu0 0.0
    %48 = vmatprep.subr.mxu0 0.0
    %49 = vmatpush1.msra.mxu0 0.0
    %50 = vmatprep.subr.mxu0 0.0
    %51 = vmatpush1.msra.mxu0 0.0
    %52 = vmatprep.subr.mxu0 0.0
    %53 = vmatpush1.msra.mxu0 0.0
    %54 = vmatprep.subr.mxu0 0.0
    %55 = vmatpush1.msra.mxu0 0.0
    %56 = vmatprep.subr.mxu0 0.0
    %57 = vmatpush1.msra.mxu0 0.0
    %58 = vmatprep.subr.mxu0 0.0
    %59 = vmatpush1.msra.mxu0 0.0
    %60 = vmatprep.subr.mxu0 0.0
    %61 = vmatpush1.msra.mxu0 0.0
    %62 = vmatprep.subr.mxu0 0.0
    %63 = vmatpush1.msra.mxu0 0.0
    %64 = vmatprep.subr.mxu0 0.0
    %65 = vmatpush1.msra.mxu0 0.0
    %66 = vmatprep.subr.mxu0 0.0
    %67 = vmatpush1.msra.mxu0 0.0
    %68 = vmatprep.subr.mxu0 0.0
    %69 = vmatpush1.msra.mxu0 0.0
    %70 = vmatprep.subr.mxu0 0.0
    %71 = vmatpush1.msra.mxu0 0.0
    %72 = vmatprep.subr.mxu0 0.0
    %73 = vmatpush1.msra.mxu0 0.0
    %74 = vmatprep.subr.mxu0 0.0
    %75 = vmatpush1.msra.mxu0 0.0
    %76 = vmatprep.subr.mxu0 0.0
    %77 = vmatpush1.msra.mxu0 0.0
    %78 = vmatprep.subr.mxu0 0.0
    %79 = vmatpush1.msra.mxu0 0.0
    %80 = vmatprep.subr.mxu0 0.0
    %81 = vmatpush1.msra.mxu0 0.0
    %82 = vmatprep.subr.mxu0 0.0
    %83 = vmatpush1.msra.mxu0 0.0
    %84 = vmatprep.subr.mxu0 0.0
    %85 = vmatpush1.msra.mxu0 0.0
    %86 = vmatprep.subr.mxu0 0.0
    %87 = vmatpush1.msra.mxu0 0.0
    %88 = vmatprep.subr.mxu0 0.0
    %89 = vmatpush1.msra.mxu0 0.0
    %90 = vmatprep.subr.mxu0 0.0
    %91 = vmatpush1.msra.mxu0 0.0
    %92 = vmatprep.subr.mxu0 0.0
    %93 = vmatpush1.msra.mxu0 0.0
    %94 = vmatprep.subr.mxu0 0.0
    %95 = vmatpush1.msra.mxu0 0.0
    %96 = vmatprep.subr.mxu0 0.0
    %97 = vmatpush1.msra.mxu0 0.0
    %98 = vmatprep.subr.mxu0 0.0
    %99 = vmatpush1.msra.mxu0 0.0
    %100 = vmatprep.mubr.f32.mxu0 0.0
    %101 = vmatmul.mubr.f32.gmra.mrb[0].mxu0 %v30
    %v102 = vpop.f32.mrb[0].mxu0
    %v103 = vadd.f32 0.0, %v102
    %v104 = vpop.f32.mrb[0].mxu0
    %105 = vdwg.mxu0
    %v106 = vld [vmem:[#allocation2 + $0x20] sm:$0x3]
    %v107 = vmul.f32 %v106, %v103
    %108 = vst [vmem:[#allocation5] sm:$0x3] %v107
    %v109 = vld [vmem:[#allocation2 + $0x22] sm:$0x3]
    %v110 = vmul.f32 %v109, %v103
    %111 = vst [vmem:[#allocation5 + $0x2] sm:$0x3] %v110
    // Predicated region
    $region10: #{tpu_custom_call.1} parent=1 // pred_check
      _
    $region11: #{tpu_custom_call.1} parent=1 // pred_check_branch
      %113 = sbr.rel (0) target = $region13
    $region12: #{tpu_custom_call.1} parent=1 // pred_region
      %s115 = ssub.s32 64, 64
      %116 = vsyncadd [#allocation4], %s115
      %s118 = sshll.u32 [#allocation5], 4
      %s119 = int_to_ptr.vmem [resolvable:$true] %s118
      %121 = dma.vmem_to_hbm [thread:$0]  %s119, 64, %s1, [#allocation4]
    $region13: #{tpu_custom_call.1} parent=1 // pred_fallthru
      _
    // Predicated region
    $region14: #{tpu_custom_call.1} parent=1 // pred_check
      _
    $region15: #{tpu_custom_call.1} parent=1 // pred_check_branch
      %123 = sbr.rel (0) target = $region17
    $region16: #{tpu_custom_call.1} parent=1 // pred_region
      %124 = dma.done [#allocation4], 64
    $region17: #{tpu_custom_call.1} parent=1 // pred_fallthru
      _
    %125 = vsyncpa [#allocation3], 1
    %126 = vsyncpa [#allocation4], 1

</llo_original>
